<compile_context>
chip_gen: v6e
topology: v6e:2x2x1
jax: 0.10.0
libtpu: 0.0.40
codegen_flags: <defaults>
</compile_context>

<pallas_src>
import functools
import math

import jax
import jax.numpy as jnp
from jax.experimental import pallas as pl
from jax.experimental.pallas import tpu as pltpu


# ---------------------------------------------------------------------------
# Kernel
# ---------------------------------------------------------------------------
def _transformer_block_kernel(q_ref, k_ref, v_ref,
                              w1t_ref, b1_ref, w2t_ref, b2_ref,
                              gamma_ref, beta_ref,
                              o_ref,
                              *, scale, is_layer_norm, d_true, u_true,
                              mxu_dtype):
    bb, rb, d_pad = q_ref.shape
    u_pad = k_ref.shape[1]

    q0 = q_ref[...].astype(jnp.float32)               # (bb, RB, Dp)
    k = k_ref[...]                                     # (bb, Up, Dp)
    v = v_ref[...]                                     # (bb, Up, Dp)

    # --- scaled dot-product attention (batched matmuls on the MXU) --------
    # Fold 1/sqrt(dk) into Q (R*Dp elems) instead of scaling the (R,U) scores.
    q_scaled = q0 * scale
    s = jnp.einsum('brd,bud->bru',
                   q_scaled.astype(mxu_dtype), k.astype(mxu_dtype),
                   preferred_element_type=jnp.float32)          # (bb, RB, Up)
    if u_pad != u_true:
        # Padded key columns must not receive softmax mass.
        key_lane = jax.lax.broadcasted_iota(jnp.int32, s.shape, 2)
        s = jnp.where(key_lane < u_true, s, jnp.float32(-1e30))

    s_max = jnp.max(s, axis=-1, keepdims=True)
    p = jnp.exp(s - s_max)
    # Exact reciprocal: approx=True's ~1e-3 relative error broke correctness.
    p = p / jnp.sum(p, axis=-1, keepdims=True)
    v_att = jnp.einsum('bru,bud->brd',
                       p.astype(mxu_dtype), v.astype(mxu_dtype),
                       preferred_element_type=jnp.float32)      # (bb, RB, Dp)

    # Residual, then flatten (batch, rows) into a sublane/lane-dense 2-D slab.
    x = (q0 + v_att).reshape(bb * rb, d_pad)

    gamma = gamma_ref[...]                             # (1, Dp), f32
    beta = beta_ref[...]                               # (1, Dp), f32

    # Lane mask hoisted once per grid step and reused by both LayerNorm calls.
    if d_pad != d_true:
        lane = jax.lax.broadcasted_iota(jnp.int32, (bb * rb, d_pad), 1)
        d_mask = lane < d_true
    else:
        d_mask = None

    def layer_norm(t):
        inv_d = 1.0 / float(d_true)
        # Padded lanes of t are exactly zero -> plain sum is already the true sum.
        mu = jnp.sum(t, axis=-1, keepdims=True) * inv_d
        tc = t - mu
        if d_mask is not None:
            tc = jnp.where(d_mask, tc, 0.0)
        var = jnp.sum(tc * tc, axis=-1, keepdims=True) * inv_d
        # gamma/beta are zero-padded, so padded lanes stay exactly zero.
        return tc * jax.lax.rsqrt(var + 1e-5) * gamma + beta

    if is_layer_norm:
        x = layer_norm(x)

    # --- FFN: weights pre-transposed + pre-cast in prepare_params ---------
    h = jnp.maximum(
        jnp.dot(x.astype(mxu_dtype), w1t_ref[...],
                preferred_element_type=jnp.float32) + b1_ref[...], 0.0)
    ffn = jnp.dot(h.astype(mxu_dtype), w2t_ref[...],
                  preferred_element_type=jnp.float32) + b2_ref[...]

    out = ffn + x
    if is_layer_norm:
        out = layer_norm(out)

    o_ref[...] = out.reshape(bb, rb, d_pad).astype(o_ref.dtype)


# ---------------------------------------------------------------------------
# Wrapper helpers
# ---------------------------------------------------------------------------
def _round_up(x, m):
    return ((x + m - 1) // m) * m


def _vmem_cap_bytes():
    """Physical-VMEM-aware cap: ~75% of capacity, never above 100 MiB.

    v5e/v6e (128 MiB/TC) -> 96 MiB; v7x (64 MiB/TC) -> 48 MiB, leaving
    headroom for Mosaic internal scratch, semaphores and pipeline slack."""
    phys = 128 * 1024 * 1024
    try:
        phys = int(pltpu.get_tpu_info().vmem_capacity_bytes)
    except Exception:  # not on a TPU (e.g. interpret mode) -> conservative default
        pass
    return min((phys * 3) // 4, 100 * 1024 * 1024)


def _tile_bytes(bb, rb, up, dp):
    """Rough f32 bytes of activations + double-buffered I/O for one grid step."""
    return 4 * (2 * bb * rb * up       # s and p score/prob tiles (both live)
                + 6 * bb * rb * dp     # q, x, h, ffn/out + mxu-dtype casts
                + 4 * bb * up * dp     # K and V input blocks, double-buffered
                + 4 * bb * rb * dp)    # Q input + output blocks, double-buffered


def _pick_blocks(B, Rp, Up, Dp, *, budget_bytes):
    """Largest (batch-block, row-block) tile that fits the activation budget.

    Fatter tiles amortize the ~0.35us/step overhead and keep BB*RB (the M dim
    of both FFN matmuls) as close to the 256-wide MXU as the problem allows."""
    bb = max(1, min(B, budget_bytes // max(_tile_bytes(1, Rp, Up, Dp), 1)))
    while B % bb:
        bb -= 1
    rb = Rp
    while _tile_bytes(bb, rb, Up, Dp) > budget_bytes and rb > 8:
        rb = max(8, (rb // 2 // 8) * 8)
        while Rp % rb:
            rb -= 8
    # Keep >=2 "parallel" grid steps so v7x's two TensorCores / megacore both
    # get work.  (On single-TC v5e/v6e this is a no-op cost at these tile sizes.)
    if B >= 2 and (B // bb) * (Rp // rb) < 2:
        bb = max(1, B // 2)
        while B % bb:
            bb -= 1
    return bb, rb


def prepare_params(params, *, matmul_dtype=jnp.bfloat16):
    """One-time parameter preparation: transpose, lane-pad and cast weights.

    Done once, outside the per-call path, so each forward pays no XLA
    transpose/pad pass over the D x D weights."""
    w1, b1, w2, b2, gamma, beta = params
    d = w1.shape[0]
    dp = _round_up(d, 128)
    pd = dp - d
    pad2 = lambda t: jnp.pad(t, ((0, pd), (0, pd))).astype(matmul_dtype)
    pad1 = lambda t: jnp.pad(t.reshape(1, d), ((0, 0), (0, pd))).astype(jnp.float32)
    return dict(
        w1t=pad2(w1.T), w2t=pad2(w2.T),          # pre-transposed: y = x @ W^T
        b1=pad1(b1), b2=pad1(b2), gamma=pad1(gamma), beta=pad1(beta),
        d=d, dp=dp, matmul_dtype=matmul_dtype)


def transformer_block(Q, K, V, prepped, *, is_layer_norm=False, epsilon=1e-8):
    """Q: (B, R, D), K/V: (B, U, D)  ->  (B, R, D)."""
    B, R, D = Q.shape
    _, U, _ = K.shape
    assert D == prepped["d"], "params prepared for a different embedding dim"
    Dp = prepped["dp"]
    mxu_dtype = prepped["matmul_dtype"]
    scale = 1.0 / (math.sqrt(max(1.0, float(D))) + epsilon)

    # Lane/sublane-dense padding:
    #   D -> multiple of 128 (zero padding is exact for attention/residual/FFN),
    #   R -> multiple of 8   (free (bb,R,Dp)<->(bb*R,Dp) relayout; rows sliced off),
    #   U -> multiple of 128 (lane-dense score tile; padded keys masked to -1e30).
    Rp = _round_up(R, 8)
    Up = _round_up(U, 128)
    Qp = jnp.pad(Q, ((0, 0), (0, Rp - R), (0, Dp - D)))
    Kp = jnp.pad(K, ((0, 0), (0, Up - U), (0, Dp - D)))
    Vp = jnp.pad(V, ((0, 0), (0, Up - U), (0, Dp - D)))

    cap = _vmem_cap_bytes()
    act_budget = min(32 * 1024 * 1024, cap // 3)   # ~32 MiB on v5e/v6e, ~16 MiB on v7x
    BB, RB = _pick_blocks(B, Rp, Up, Dp, budget_bytes=act_budget)
    grid = (B // BB, Rp // RB)

    # Explicit VMEM budget from the actual tile sizes (weights counted at
    # double-buffer depth; s and p counted as two live buffers).
    w_bytes = jnp.dtype(mxu_dtype).itemsize
    est = (_tile_bytes(BB, RB, Up, Dp)
           + 2 * 2 * Dp * Dp * w_bytes             # W1^T, W2^T (x2 buffering)
           + 8 * 4 * Dp)                           # biases / gamma / beta
    vmem_limit = int(min(max(2 * est, 8 * 1024 * 1024), cap))

    kernel = functools.partial(_transformer_block_kernel,
                               scale=scale,
                               is_layer_norm=is_layer_norm,
                               d_true=D,
                               u_true=U,
                               mxu_dtype=mxu_dtype)

    inv = lambda b, r: (0, 0)   # loop-invariant operands (constant block index)
    out = pl.pallas_call(
        kernel,
        out_shape=jax.ShapeDtypeStruct((B, Rp, Dp), Q.dtype),
        grid_spec=pltpu.PrefetchScalarGridSpec(
            num_scalar_prefetch=0,
            grid=grid,
            in_specs=[
                pl.BlockSpec((BB, RB, Dp), lambda b, r: (b, r, 0)),   # Q
                pl.BlockSpec((BB, Up, Dp), lambda b, r: (b, 0, 0)),   # K
                pl.BlockSpec((BB, Up, Dp), lambda b, r: (b, 0, 0)),   # V
                pl.BlockSpec((Dp, Dp), inv),                          # W1^T
                pl.BlockSpec((1, Dp), inv),                           # b1
                pl.BlockSpec((Dp, Dp), inv),                          # W2^T
                pl.BlockSpec((1, Dp), inv),                           # b2
                pl.BlockSpec((1, Dp), inv),                           # gamma
                pl.BlockSpec((1, Dp), inv),                           # beta
            ],
            out_specs=pl.BlockSpec((BB, RB, Dp), lambda b, r: (b, r, 0)),
        ),
        compiler_params=pltpu.CompilerParams(
            dimension_semantics=("parallel", "parallel"),
            vmem_limit_bytes=vmem_limit),
    )(Qp, Kp, Vp, prepped["w1t"], prepped["b1"], prepped["w2t"],
      prepped["b2"], prepped["gamma"], prepped["beta"])

    return out[:, :R, :D]


# ---------------------------------------------------------------------------
# Parameter init + pure-JAX reference (mirrors the PyTorch module)
# ---------------------------------------------------------------------------
def init_params(key, D):
    """Deterministic parameter init mirroring the module's __init__."""
    k1, k2, k3, k4 = jax.random.split(key, 4)
    xavier_std = math.sqrt(2.0 / (D + D))          # xavier_normal_ for (D, D)
    w1 = xavier_std * jax.random.normal(k1, (D, D), jnp.float32)
    w2 = xavier_std * jax.random.normal(k2, (D, D), jnp.float32)
    bound = 1.0 / math.sqrt(D)                     # PyTorch default bias init
    b1 = jax.random.uniform(k3, (D,), jnp.float32, -bound, bound)
    b2 = jax.random.uniform(k4, (D,), jnp.float32, -bound, bound)
    gamma = jnp.ones((D,), jnp.float32)            # LayerNorm affine params
    beta = jnp.zeros((D,), jnp.float32)
    return (w1, b1, w2, b2, gamma, beta)


def reference(Q, K, V, params, *, is_layer_norm=False, epsilon=1e-8):
    w1, b1, w2, b2, gamma, beta = params
    D = Q.shape[-1]
    dk = max(1.0, float(D))
    s = jnp.einsum('brd,bud->bru', Q, K) / (math.sqrt(dk) + epsilon)
    p = jax.nn.softmax(s, axis=-1)
    v_att = jnp.einsum('bru,bud->brd', p, V)
    x = Q + v_att
    ln = lambda t: (t - t.mean(-1, keepdims=True)) * jax.lax.rsqrt(
        t.var(-1, keepdims=True) + 1e-5) * gamma + beta
    if is_layer_norm:
        x = ln(x)
    h = jnp.maximum(x @ w1.T + b1, 0.0)
    out = (h @ w2.T + b2) + x
    if is_layer_norm:
        out = ln(out)
    return out


if __name__ == "__main__":
    key = jax.random.PRNGKey(0)
    kq, kk, kv, kp = jax.random.split(key, 4)

    B, R, U, D = 2, 8, 8, 32   # batch, max_r_words, max_u_words, embedding_dim
    Q = jax.random.normal(kq, (B, R, D), jnp.float32)
    K = jax.random.normal(kk, (B, U, D), jnp.float32)
    V = jax.random.normal(kv, (B, U, D), jnp.float32)
    params = init_params(kp, D)

    # f32 MXU path: tight agreement with the f32 reference.
    # bf16 MXU path (production default): looser tolerance from bf16 rounding.
    configs = ((jnp.float32, 2e-3, 2e-3), (jnp.bfloat16, 5e-2, 5e-2))
    for mxu_dtype, atol, rtol in configs:
        prepped = prepare_params(params, matmul_dtype=mxu_dtype)
        for ln_flag in (False, True):
            out = transformer_block(Q, K, V, prepped, is_layer_norm=ln_flag)
            jax.block_until_ready(out)
            ref = reference(Q, K, V, params, is_layer_norm=ln_flag)
            assert out.shape == (B, R, D)
            max_err = float(jnp.max(jnp.abs(out - ref)))
            assert jnp.allclose(out, ref, atol=atol, rtol=rtol), (
                f"mismatch (mxu_dtype={jnp.dtype(mxu_dtype).name}, "
                f"is_layer_norm={ln_flag}, max_abs_err={max_err})")

    print("KERNEL_OK")
</pallas_src>

<mosaic_0001>
module attributes {stable_mosaic.version = 11 : i64} {
  func.func @_transformer_block_kernel(%arg0: i32, %arg1: i32, %arg2: memref<1x8x128xf32, #tpu.memory_space<vmem>>, %arg3: memref<1x128x128xf32, #tpu.memory_space<vmem>>, %arg4: memref<1x128x128xf32, #tpu.memory_space<vmem>>, %arg5: memref<128x128xf32, #tpu.memory_space<vmem>>, %arg6: memref<1x128xf32, #tpu.memory_space<vmem>>, %arg7: memref<128x128xf32, #tpu.memory_space<vmem>>, %arg8: memref<1x128xf32, #tpu.memory_space<vmem>>, %arg9: memref<1x128xf32, #tpu.memory_space<vmem>>, %arg10: memref<1x128xf32, #tpu.memory_space<vmem>>, %arg11: memref<1x8x128xf32, #tpu.memory_space<vmem>>) attributes {dimension_semantics = [#tpu.dimension_semantics<parallel>, #tpu.dimension_semantics<parallel>], iteration_bounds = array<i64: 2, 1>, scalar_prefetch = 0 : i64, scratch_operands = 0 : i64, tpu.core_type = #tpu.core_type<tc>, window_params = [{transform_indices = @transform_0, window_bounds = array<i64: 1, 8, 128>}, {transform_indices = @transform_1, window_bounds = array<i64: 1, 128, 128>}, {transform_indices = @transform_2, window_bounds = array<i64: 1, 128, 128>}, {pipeline_mode = #tpu.pipeline_mode<synchronous>, transform_indices = @transform_3, window_bounds = array<i64: 128, 128>}, {pipeline_mode = #tpu.pipeline_mode<synchronous>, transform_indices = @transform_4, window_bounds = array<i64: 1, 128>}, {pipeline_mode = #tpu.pipeline_mode<synchronous>, transform_indices = @transform_5, window_bounds = array<i64: 128, 128>}, {pipeline_mode = #tpu.pipeline_mode<synchronous>, transform_indices = @transform_6, window_bounds = array<i64: 1, 128>}, {pipeline_mode = #tpu.pipeline_mode<synchronous>, transform_indices = @transform_7, window_bounds = array<i64: 1, 128>}, {pipeline_mode = #tpu.pipeline_mode<synchronous>, transform_indices = @transform_8, window_bounds = array<i64: 1, 128>}, {transform_indices = @transform_9, window_bounds = array<i64: 1, 8, 128>}]} {
    %c0 = arith.constant 0 : index
    %c0_0 = arith.constant 0 : index
    %c0_1 = arith.constant 0 : index
    %0 = vector.load %arg2[%c0, %c0_0, %c0_1] : memref<1x8x128xf32, #tpu.memory_space<vmem>>, vector<1x8x128xf32>
    %c0_2 = arith.constant 0 : index
    %c0_3 = arith.constant 0 : index
    %c0_4 = arith.constant 0 : index
    %1 = vector.load %arg3[%c0_2, %c0_3, %c0_4] : memref<1x128x128xf32, #tpu.memory_space<vmem>>, vector<1x128x128xf32>
    %c0_5 = arith.constant 0 : index
    %c0_6 = arith.constant 0 : index
    %c0_7 = arith.constant 0 : index
    %2 = vector.load %arg4[%c0_5, %c0_6, %c0_7] : memref<1x128x128xf32, #tpu.memory_space<vmem>>, vector<1x128x128xf32>
    %cst = arith.constant 0.176776692 : f32
    %3 = vector.broadcast %cst : f32 to vector<1x8x128xf32>
    %4 = arith.mulf %0, %3 : vector<1x8x128xf32>
    "tpu.trace_start"() <{level = 10 : i32, message = "brd,bud->bru"}> : () -> ()
    %cst_8 = arith.constant dense<0.000000e+00> : vector<1x8x128xf32>
    %5 = tpu.matmul %4, %1, %cst_8 {dimension_numbers = #tpu.dot_dimension_numbers<[2], [2], [1], [1], [0, 0, 0, 1, 1, 1], [0], [0]>} : vector<1x8x128xf32>, vector<1x128x128xf32>, vector<1x8x128xf32> -> vector<1x8x128xf32>
    "tpu.trace_stop"() : () -> ()
    %6 = tpu.iota {dimensions = array<i32: 2>} : vector<1x8x128xi32>
    %c8_i32 = arith.constant 8 : i32
    %7 = vector.broadcast %c8_i32 : i32 to vector<1x8x128xi32>
    %8 = arith.cmpi slt, %6, %7 : vector<1x8x128xi32>
    %cst_9 = arith.constant -1.000000e+30 : f32
    %9 = vector.broadcast %cst_9 : f32 to vector<1x8x128xf32>
    %10 = arith.select %8, %5, %9 : vector<1x8x128xi1>, vector<1x8x128xf32>
    %cst_10 = arith.constant dense<0xFF800000> : vector<1x8xf32>
    %11 = vector.multi_reduction <maximumf>, %10, %cst_10 [2] : vector<1x8x128xf32> to vector<1x8xf32>
    %12 = vector.shape_cast %11 : vector<1x8xf32> to vector<1x8x1xf32>
    %13 = vector.broadcast %12 : vector<1x8x1xf32> to vector<1x8x128xf32>
    %14 = arith.subf %10, %13 : vector<1x8x128xf32>
    %15 = math.exp %14 : vector<1x8x128xf32>
    %cst_11 = arith.constant dense<0.000000e+00> : vector<1x8xf32>
    %16 = vector.multi_reduction <add>, %15, %cst_11 [2] : vector<1x8x128xf32> to vector<1x8xf32>
    %17 = vector.shape_cast %16 : vector<1x8xf32> to vector<1x8x1xf32>
    %18 = vector.broadcast %17 : vector<1x8x1xf32> to vector<1x8x128xf32>
    %19 = arith.divf %15, %18 : vector<1x8x128xf32>
    "tpu.trace_start"() <{level = 10 : i32, message = "bru,bud->brd"}> : () -> ()
    %cst_12 = arith.constant dense<0.000000e+00> : vector<1x8x128xf32>
    %20 = tpu.matmul %19, %2, %cst_12 {dimension_numbers = #tpu.dot_dimension_numbers<[2], [1], [1], [2], [0, 0, 0, 1, 1, 2], [0], [0]>} : vector<1x8x128xf32>, vector<1x128x128xf32>, vector<1x8x128xf32> -> vector<1x8x128xf32>
    "tpu.trace_stop"() : () -> ()
    %21 = arith.addf %0, %20 : vector<1x8x128xf32>
    %22 = vector.shape_cast %21 : vector<1x8x128xf32> to vector<8x128xf32>
    %c0_13 = arith.constant 0 : index
    %c0_14 = arith.constant 0 : index
    %23 = vector.load %arg5[%c0_13, %c0_14] : memref<128x128xf32, #tpu.memory_space<vmem>>, vector<128x128xf32>
    %cst_15 = arith.constant dense<0.000000e+00> : vector<8x128xf32>
    %24 = tpu.matmul %22, %23, %cst_15 {dimension_numbers = #tpu.dot_dimension_numbers<[1], [0], [0], [1], [0, 0, 1, 1], [], []>} : vector<8x128xf32>, vector<128x128xf32>, vector<8x128xf32> -> vector<8x128xf32>
    %c0_16 = arith.constant 0 : index
    %c0_17 = arith.constant 0 : index
    %25 = vector.load %arg6[%c0_16, %c0_17] : memref<1x128xf32, #tpu.memory_space<vmem>>, vector<1x128xf32>
    %26 = vector.broadcast %25 : vector<1x128xf32> to vector<8x128xf32>
    %27 = arith.addf %24, %26 : vector<8x128xf32>
    %cst_18 = arith.constant 0.000000e+00 : f32
    %28 = vector.broadcast %cst_18 : f32 to vector<8x128xf32>
    %29 = arith.maximumf %27, %28 : vector<8x128xf32>
    %c0_19 = arith.constant 0 : index
    %c0_20 = arith.constant 0 : index
    %30 = vector.load %arg7[%c0_19, %c0_20] : memref<128x128xf32, #tpu.memory_space<vmem>>, vector<128x128xf32>
    %cst_21 = arith.constant dense<0.000000e+00> : vector<8x128xf32>
    %31 = tpu.matmul %29, %30, %cst_21 {dimension_numbers = #tpu.dot_dimension_numbers<[1], [0], [0], [1], [0, 0, 1, 1], [], []>} : vector<8x128xf32>, vector<128x128xf32>, vector<8x128xf32> -> vector<8x128xf32>
    %c0_22 = arith.constant 0 : index
    %c0_23 = arith.constant 0 : index
    %32 = vector.load %arg8[%c0_22, %c0_23] : memref<1x128xf32, #tpu.memory_space<vmem>>, vector<1x128xf32>
    %33 = vector.broadcast %32 : vector<1x128xf32> to vector<8x128xf32>
    %34 = arith.addf %31, %33 : vector<8x128xf32>
    %35 = arith.addf %34, %22 : vector<8x128xf32>
    %36 = vector.shape_cast %35 : vector<8x128xf32> to vector<1x8x128xf32>
    %c0_24 = arith.constant 0 : index
    %c0_25 = arith.constant 0 : index
    %c0_26 = arith.constant 0 : index
    %37 = vector.load %arg11[%c0_24, %c0_25, %c0_26] : memref<1x8x128xf32, #tpu.memory_space<vmem>>, vector<1x8x128xf32>
    tpu.vector_store %arg11[%c0_24, %c0_25, %c0_26], %36 {strides = array<i32>} : memref<1x8x128xf32, #tpu.memory_space<vmem>>, vector<1x8x128xf32>,
    return
  }
  func.func @transform_0(%arg0: i32, %arg1: i32) -> (i32, i32, i32) {
    %c0_i32 = arith.constant 0 : i32
    %c0_i32_0 = arith.constant 0 : i32
    return %arg0, %arg1, %c0_i32 : i32, i32, i32
  }
  func.func @transform_1(%arg0: i32, %arg1: i32) -> (i32, i32, i32) {
    %c0_i32 = arith.constant 0 : i32
    %c0_i32_0 = arith.constant 0 : i32
    %c0_i32_1 = arith.constant 0 : i32
    return %arg0, %c0_i32, %c0_i32_0 : i32, i32, i32
  }
  func.func @transform_2(%arg0: i32, %arg1: i32) -> (i32, i32, i32) {
    %c0_i32 = arith.constant 0 : i32
    %c0_i32_0 = arith.constant 0 : i32
    %c0_i32_1 = arith.constant 0 : i32
    return %arg0, %c0_i32, %c0_i32_0 : i32, i32, i32
  }
  func.func @transform_3(%arg0: i32, %arg1: i32) -> (i32, i32) {
    %c0_i32 = arith.constant 0 : i32
    %c0_i32_0 = arith.constant 0 : i32
    %c0_i32_1 = arith.constant 0 : i32
    return %c0_i32, %c0_i32_0 : i32, i32
  }
  func.func @transform_4(%arg0: i32, %arg1: i32) -> (i32, i32) {
    %c0_i32 = arith.constant 0 : i32
    %c0_i32_0 = arith.constant 0 : i32
    %c0_i32_1 = arith.constant 0 : i32
    return %c0_i32, %c0_i32_0 : i32, i32
  }
  func.func @transform_5(%arg0: i32, %arg1: i32) -> (i32, i32) {
    %c0_i32 = arith.constant 0 : i32
    %c0_i32_0 = arith.constant 0 : i32
    %c0_i32_1 = arith.constant 0 : i32
    return %c0_i32, %c0_i32_0 : i32, i32
  }
  func.func @transform_6(%arg0: i32, %arg1: i32) -> (i32, i32) {
    %c0_i32 = arith.constant 0 : i32
    %c0_i32_0 = arith.constant 0 : i32
    %c0_i32_1 = arith.constant 0 : i32
    return %c0_i32, %c0_i32_0 : i32, i32
  }
  func.func @transform_7(%arg0: i32, %arg1: i32) -> (i32, i32) {
    %c0_i32 = arith.constant 0 : i32
    %c0_i32_0 = arith.constant 0 : i32
    %c0_i32_1 = arith.constant 0 : i32
    return %c0_i32, %c0_i32_0 : i32, i32
  }
  func.func @transform_8(%arg0: i32, %arg1: i32) -> (i32, i32) {
    %c0_i32 = arith.constant 0 : i32
    %c0_i32_0 = arith.constant 0 : i32
    %c0_i32_1 = arith.constant 0 : i32
    return %c0_i32, %c0_i32_0 : i32, i32
  }
  func.func @transform_9(%arg0: i32, %arg1: i32) -> (i32, i32, i32) {
    %c0_i32 = arith.constant 0 : i32
    %c0_i32_0 = arith.constant 0 : i32
    return %arg0, %arg1, %c0_i32 : i32, i32, i32
  }
}

</mosaic_0001>

<llo_original>
// kernel: tpu_custom_call.1
$region0: #{tpu_custom_call.1}
  #allocation0 [shape = 'u32[]', space=smem, size = 0x4, offset = 0x4, fixed_abs, tag = 'smem constant byte address 0x4 - core index']
  #allocation1 [shape = 'u32[144,128]{1,0:T(1,128)}', space=vmem, size = 0x12000, scoped, tag = 'internal scratch']
  %s0 = inlined_call_operand.hbm [shape: f32[2,8,128], index: 0, kind: input, shape index: {}]
  %s1 = inlined_call_operand.hbm [shape: f32[2,128,128], index: 1, kind: input, shape index: {}]
  %s2 = inlined_call_operand.hbm [shape: f32[2,128,128], index: 2, kind: input, shape index: {}]
  %s3 = inlined_call_operand.hbm [shape: f32[128,128], index: 3, kind: input, shape index: {}]
  %s4 = inlined_call_operand.vmem [shape: f32[1,128], index: 4, kind: input, shape index: {}]
  %s5 = inlined_call_operand.hbm [shape: f32[128,128], index: 5, kind: input, shape index: {}]
  %s6 = inlined_call_operand.vmem [shape: f32[1,128], index: 6, kind: input, shape index: {}]
  %s7 = inlined_call_operand.vmem [shape: f32[1,128], index: 7, kind: input, shape index: {}]
  %s8 = inlined_call_operand.vmem [shape: f32[1,128], index: 8, kind: input, shape index: {}]
  %s9 = inlined_call_operand.hbm [shape: f32[2,8,128], index: 9, kind: output, shape index: {}]
  %s10 = sld [smem:[#allocation0]]
  $region89: #{tpu_custom_call.1} parent=0
    _
  %s12 = ssub.s32 1, %s10
  %s13 = scalar_select 0, %s12, %s10
  $region1: #{tpu_custom_call.1} parent=0
    #allocation2 [shape = 'u8[8192]{0}', space=vmem, size = 0x2000, scoped, tag = 'input window, operand 0']
    #allocation3 [shape = 's32[2]{0}', space=sflag, size = 0x8, scoped, tag = 'scoped memory for tpu_custom_call.1']
    #allocation4 [shape = 's32[2]{0}', space=sflag, size = 0x8, scoped, tag = 'scoped memory for tpu_custom_call.1']
    #allocation5 [shape = 'u8[131072]{0}', space=vmem, size = 0x20000, scoped, tag = 'input window, operand 1']
    #allocation6 [shape = 's32[2]{0}', space=sflag, size = 0x8, scoped, tag = 'scoped memory for tpu_custom_call.1']
    #allocation7 [shape = 'u8[131072]{0}', space=vmem, size = 0x20000, scoped, tag = 'input window, operand 2']
    #allocation8 [shape = 'u8[65536]{0}', space=vmem, size = 0x10000, scoped, tag = 'input window, operand 3, single buffered']
    #allocation9 [shape = 's32[1]{0}', space=sflag, size = 0x4, scoped, tag = 'scoped memory for tpu_custom_call.1']
    #allocation10 [shape = 'u8[65536]{0}', space=vmem, size = 0x10000, scoped, tag = 'input window, operand 5, single buffered']
    #allocation11 [shape = 'u8[8192]{0}', space=vmem, size = 0x2000, scoped, tag = 'output window, operand 0']
    %14 = vsyncpa [#allocation3], 0
    %s15 = scalar_lea.sflag [#allocation3], 1
    %16 = vsyncpa %s15, 0
    %17 = vsyncpa [#allocation6], 0
    %s18 = scalar_lea.sflag [#allocation6], 1
    %19 = vsyncpa %s18, 0
    %20 = vsyncpa [#allocation9], 0
    %21 = vsyncpa [#allocation4], 0
    %s22 = scalar_lea.sflag [#allocation4], 1
    %23 = vsyncpa %s22, 0
    loop: start=0, step=1, limit=4
    $region2: #{tpu_custom_call.1} parent=1 // loop_pre_header
      _
    $region3: #{tpu_custom_call.1} parent=1 // loop_header
      %s25 = sphi 0, %s29
      %p26 = scmp.ge.s32.totalorder %s25, 4
      %s32 = sphi 0, %s44
      %s33 = sphi 0, %s40
      %s34 = sphi 0, %s32
      %s35 = sphi 0, %s33
      %s36 = sphi 0, %s34
      %s37 = sphi 0, %s35
      %s49 = sphi 0, %s51
      %s52 = sphi 0, %s49
      %s53 = sphi 0, %s52
      %s69 = sphi 0, %s53
      %s75 = sphi 0, %s77
      %s78 = sphi 0, %s75
      %s79 = sphi 0, %s78
      %s95 = sphi 0, %s79
      %s101 = sphi 0, %s103
      %s104 = sphi 0, %s101
      %s105 = sphi 0, %s104
      %s121 = sphi 0, %s105
      %s125 = sphi 0, %s125
      %s127 = sphi 0, %s125
      %s128 = sphi 0, %s127
      %s142 = sphi 0, %s128
      %s146 = sphi 0, %s146
      %s148 = sphi 0, %s146
      %s149 = sphi 0, %s148
      %s163 = sphi 0, %s149
      %s167 = sphi 0, %s167
      %s169 = sphi 0, %s167
      %s170 = sphi 0, %s169
      %s184 = sphi 0, %s170
      %s188 = sphi 0, %s188
      %s190 = sphi 0, %s188
      %s191 = sphi 0, %s190
      %s205 = sphi 0, %s191
      %s209 = sphi 0, %s209
      %s211 = sphi 0, %s209
      %s212 = sphi 0, %s211
      %s226 = sphi 0, %s212
      %s230 = sphi 0, %s230
      %s232 = sphi 0, %s230
      %s233 = sphi 0, %s232
      %s247 = sphi 0, %s233
      %s255 = sphi 0, %s257
      %s258 = sphi 0, %s255
      %s259 = sphi 0, %s258
      %s275 = sphi 0, %s259
    $region4: #{tpu_custom_call.1} parent=1 // loop_header_branch
      %28 = sbr.rel (%p26) target = $region8
    $region5: #{tpu_custom_call.1} parent=1 // loop_body
      %s30 = ssub.s32 %s25, 1
      %s31 = ssub.s32 %s25, 2
      %s38 = sadd.s32 1, %s33
      %p39 = scmp.ge.s32.totalorder %s38, 1
      %s40 = scalar_select %p39, 0, %s38
      %s41 = sadd.s32 1, %s32
      %s42 = scalar_select %p39, %s41, %s32
      %p43 = scmp.ge.s32.totalorder %s42, 2
      %s44 = scalar_select %p43, 0, %s42
      %s45 = ssub.s32 %s32, %s44
      %s46 = ssub.s32 %s33, %s40
      %s47 = sor.u32 %s45, %s46
      %p48 = scmp.eq.s32.totalorder %s47, 0
      %s50 = sadd.s32 %s49, 1
      %s51 = scalar_select %p48, %s49, %s50
      %p54 = pneg %p48
      %p55 = scmp.eq.s32.totalorder %s25, 1
      %p56 = por %p54, %p55
      %p57 = scmp.ne.s32.totalorder %s49, %s52
      %p58 = scmp.eq.s32.totalorder %s25, 0
      %p59 = por %p57, %p58
      %p60 = scmp.ne.s32.totalorder %s49, %s52
      %p61 = scmp.eq.s32.totalorder %s30, 1
      %p62 = por %p60, %p61
      %p63 = scmp.ne.s32.totalorder %s52, %s53
      %p64 = scmp.eq.s32.totalorder %s30, 0
      %p65 = por %p63, %p64
      %p66 = scmp.ne.s32.totalorder %s52, %s53
      %p67 = scmp.eq.s32.totalorder %s31, 1
      %p68 = por %p66, %p67
      %p70 = scmp.ne.s32.totalorder %s53, %s69
      %p71 = scmp.eq.s32.totalorder %s31, 0
      %p72 = por %p70, %p71
      %s73 = ssub.s32 %s32, %s44
      %p74 = scmp.eq.s32.totalorder %s73, 0
      %s76 = sadd.s32 %s75, 1
      %s77 = scalar_select %p74, %s75, %s76
      %p80 = pneg %p74
      %p81 = scmp.eq.s32.totalorder %s25, 1
      %p82 = por %p80, %p81
      %p83 = scmp.ne.s32.totalorder %s75, %s78
      %p84 = scmp.eq.s32.totalorder %s25, 0
      %p85 = por %p83, %p84
      %p86 = scmp.ne.s32.totalorder %s75, %s78
      %p87 = scmp.eq.s32.totalorder %s30, 1
      %p88 = por %p86, %p87
      %p89 = scmp.ne.s32.totalorder %s78, %s79
      %p90 = scmp.eq.s32.totalorder %s30, 0
      %p91 = por %p89, %p90
      %p92 = scmp.ne.s32.totalorder %s78, %s79
      %p93 = scmp.eq.s32.totalorder %s31, 1
      %p94 = por %p92, %p93
      %p96 = scmp.ne.s32.totalorder %s79, %s95
      %p97 = scmp.eq.s32.totalorder %s31, 0
      %p98 = por %p96, %p97
      %s99 = ssub.s32 %s32, %s44
      %p100 = scmp.eq.s32.totalorder %s99, 0
      %s102 = sadd.s32 %s101, 1
      %s103 = scalar_select %p100, %s101, %s102
      %p106 = pneg %p100
      %p107 = scmp.eq.s32.totalorder %s25, 1
      %p108 = por %p106, %p107
      %p109 = scmp.ne.s32.totalorder %s101, %s104
      %p110 = scmp.eq.s32.totalorder %s25, 0
      %p111 = por %p109, %p110
      %p112 = scmp.ne.s32.totalorder %s101, %s104
      %p113 = scmp.eq.s32.totalorder %s30, 1
      %p114 = por %p112, %p113
      %p115 = scmp.ne.s32.totalorder %s104, %s105
      %p116 = scmp.eq.s32.totalorder %s30, 0
      %p117 = por %p115, %p116
      %p118 = scmp.ne.s32.totalorder %s104, %s105
      %p119 = scmp.eq.s32.totalorder %s31, 1
      %p120 = por %p118, %p119
      %p122 = scmp.ne.s32.totalorder %s105, %s121
      %p123 = scmp.eq.s32.totalorder %s31, 0
      %p124 = por %p122, %p123
      %s126 = sadd.s32 %s125, 1
      %p129 = scmp.eq.s32.totalorder %s25, 1
      %p130 = scmp.ne.s32.totalorder %s125, %s127
      %p131 = scmp.eq.s32.totalorder %s25, 0
      %p132 = por %p130, %p131
      %p133 = scmp.ne.s32.totalorder %s125, %s127
      %p134 = scmp.eq.s32.totalorder %s30, 1
      %p135 = por %p133, %p134
      %p136 = scmp.ne.s32.totalorder %s127, %s128
      %p137 = scmp.eq.s32.totalorder %s30, 0
      %p138 = por %p136, %p137
      %p139 = scmp.ne.s32.totalorder %s127, %s128
      %p140 = scmp.eq.s32.totalorder %s31, 1
      %p141 = por %p139, %p140
      %p143 = scmp.ne.s32.totalorder %s128, %s142
      %p144 = scmp.eq.s32.totalorder %s31, 0
      %p145 = por %p143, %p144
      %s147 = sadd.s32 %s146, 1
      %p150 = scmp.eq.s32.totalorder %s25, 1
      %p151 = scmp.ne.s32.totalorder %s146, %s148
      %p152 = scmp.eq.s32.totalorder %s25, 0
      %p153 = por %p151, %p152
      %p154 = scmp.ne.s32.totalorder %s146, %s148
      %p155 = scmp.eq.s32.totalorder %s30, 1
      %p156 = por %p154, %p155
      %p157 = scmp.ne.s32.totalorder %s148, %s149
      %p158 = scmp.eq.s32.totalorder %s30, 0
      %p159 = por %p157, %p158
      %p160 = scmp.ne.s32.totalorder %s148, %s149
      %p161 = scmp.eq.s32.totalorder %s31, 1
      %p162 = por %p160, %p161
      %p164 = scmp.ne.s32.totalorder %s149, %s163
      %p165 = scmp.eq.s32.totalorder %s31, 0
      %p166 = por %p164, %p165
      %s168 = sadd.s32 %s167, 1
      %p171 = scmp.eq.s32.totalorder %s25, 1
      %p172 = scmp.ne.s32.totalorder %s167, %s169
      %p173 = scmp.eq.s32.totalorder %s25, 0
      %p174 = por %p172, %p173
      %p175 = scmp.ne.s32.totalorder %s167, %s169
      %p176 = scmp.eq.s32.totalorder %s30, 1
      %p177 = por %p175, %p176
      %p178 = scmp.ne.s32.totalorder %s169, %s170
      %p179 = scmp.eq.s32.totalorder %s30, 0
      %p180 = por %p178, %p179
      %p181 = scmp.ne.s32.totalorder %s169, %s170
      %p182 = scmp.eq.s32.totalorder %s31, 1
      %p183 = por %p181, %p182
      %p185 = scmp.ne.s32.totalorder %s170, %s184
      %p186 = scmp.eq.s32.totalorder %s31, 0
      %p187 = por %p185, %p186
      %s189 = sadd.s32 %s188, 1
      %p192 = scmp.eq.s32.totalorder %s25, 1
      %p193 = scmp.ne.s32.totalorder %s188, %s190
      %p194 = scmp.eq.s32.totalorder %s25, 0
      %p195 = por %p193, %p194
      %p196 = scmp.ne.s32.totalorder %s188, %s190
      %p197 = scmp.eq.s32.totalorder %s30, 1
      %p198 = por %p196, %p197
      %p199 = scmp.ne.s32.totalorder %s190, %s191
      %p200 = scmp.eq.s32.totalorder %s30, 0
      %p201 = por %p199, %p200
      %p202 = scmp.ne.s32.totalorder %s190, %s191
      %p203 = scmp.eq.s32.totalorder %s31, 1
      %p204 = por %p202, %p203
      %p206 = scmp.ne.s32.totalorder %s191, %s205
      %p207 = scmp.eq.s32.totalorder %s31, 0
      %p208 = por %p206, %p207
      %s210 = sadd.s32 %s209, 1
      %p213 = scmp.eq.s32.totalorder %s25, 1
      %p214 = scmp.ne.s32.totalorder %s209, %s211
      %p215 = scmp.eq.s32.totalorder %s25, 0
      %p216 = por %p214, %p215
      %p217 = scmp.ne.s32.totalorder %s209, %s211
      %p218 = scmp.eq.s32.totalorder %s30, 1
      %p219 = por %p217, %p218
      %p220 = scmp.ne.s32.totalorder %s211, %s212
      %p221 = scmp.eq.s32.totalorder %s30, 0
      %p222 = por %p220, %p221
      %p223 = scmp.ne.s32.totalorder %s211, %s212
      %p224 = scmp.eq.s32.totalorder %s31, 1
      %p225 = por %p223, %p224
      %p227 = scmp.ne.s32.totalorder %s212, %s226
      %p228 = scmp.eq.s32.totalorder %s31, 0
      %p229 = por %p227, %p228
      %s231 = sadd.s32 %s230, 1
      %p234 = scmp.eq.s32.totalorder %s25, 1
      %p235 = scmp.ne.s32.totalorder %s230, %s232
      %p236 = scmp.eq.s32.totalorder %s25, 0
      %p237 = por %p235, %p236
      %p238 = scmp.ne.s32.totalorder %s230, %s232
      %p239 = scmp.eq.s32.totalorder %s30, 1
      %p240 = por %p238, %p239
      %p241 = scmp.ne.s32.totalorder %s232, %s233
      %p242 = scmp.eq.s32.totalorder %s30, 0
      %p243 = por %p241, %p242
      %p244 = scmp.ne.s32.totalorder %s232, %s233
      %p245 = scmp.eq.s32.totalorder %s31, 1
      %p246 = por %p244, %p245
      %p248 = scmp.ne.s32.totalorder %s233, %s247
      %p249 = scmp.eq.s32.totalorder %s31, 0
      %p250 = por %p248, %p249
      %s251 = ssub.s32 %s32, %s44
      %s252 = ssub.s32 %s33, %s40
      %s253 = sor.u32 %s251, %s252
      %p254 = scmp.eq.s32.totalorder %s253, 0
      %s256 = sadd.s32 %s255, 1
      %s257 = scalar_select %p254, %s255, %s256
      %p260 = pneg %p254
      %p261 = scmp.eq.s32.totalorder %s25, 1
      %p262 = por %p260, %p261
      %p263 = scmp.ne.s32.totalorder %s255, %s258
      %p264 = scmp.eq.s32.totalorder %s25, 0
      %p265 = por %p263, %p264
      %p266 = scmp.ne.s32.totalorder %s255, %s258
      %p267 = scmp.eq.s32.totalorder %s30, 1
      %p268 = por %p266, %p267
      %p269 = scmp.ne.s32.totalorder %s258, %s259
      %p270 = scmp.eq.s32.totalorder %s30, 0
      %p271 = por %p269, %p270
      %p272 = scmp.ne.s32.totalorder %s258, %s259
      %p273 = scmp.eq.s32.totalorder %s31, 1
      %p274 = por %p272, %p273
      %p276 = scmp.ne.s32.totalorder %s259, %s275
      %p277 = scmp.eq.s32.totalorder %s31, 0
      %p278 = por %p276, %p277
      %p279 = scmp.le.s32.totalorder 1, %s25
      %p280 = scmp.lt.s32.totalorder %s25, 3
      %p281 = pnand %p279, %p280
      %p282 = pneg %p281
      // Predicated region
      $region9: #{tpu_custom_call.1} parent=5 // pred_check
        _
      $region10: #{tpu_custom_call.1} parent=5 // pred_check_branch
        %284 = sbr.rel (%p281) target = $region12
      $region11: #{tpu_custom_call.1} parent=5 // pred_region
        %s285 = ssub.s32 %s25, 1
        // Predicated region
        $region13: #{tpu_custom_call.1} parent=11 // pred_check
          %p286 = pneg %p138
        $region14: #{tpu_custom_call.1} parent=11 // pred_check_branch
          %288 = sbr.rel (%p286) target = $region16
        $region15: #{tpu_custom_call.1} parent=11 // pred_region
          %s290 = ssub.s32 2048, 2048
          %291 = vsyncadd [#allocation9], %s290
          %s292 = sshll.u32 [#allocation8], 4
          %s293 = int_to_ptr.vmem [resolvable:$true] %s292
          %298 = dma.hbm_to_vmem [thread:$0]  %s3, 2048, %s293, [#allocation9], 128, 128, 8
        $region16: #{tpu_custom_call.1} parent=11 // pred_fallthru
          _
        // Predicated region
        $region17: #{tpu_custom_call.1} parent=11 // pred_check
          %p299 = pneg %p159
        $region18: #{tpu_custom_call.1} parent=11 // pred_check_branch
          %301 = sbr.rel (%p299) target = $region20
        $region19: #{tpu_custom_call.1} parent=11 // pred_region
          _
        $region20: #{tpu_custom_call.1} parent=11 // pred_fallthru
          _
        // Predicated region
        $region21: #{tpu_custom_call.1} parent=11 // pred_check
          %p302 = pneg %p180
        $region22: #{tpu_custom_call.1} parent=11 // pred_check_branch
          %304 = sbr.rel (%p302) target = $region24
        $region23: #{tpu_custom_call.1} parent=11 // pred_region
          %s306 = ssub.s32 2048, 2048
          %307 = vsyncadd [#allocation9], %s306
          %s308 = sshll.u32 [#allocation10], 4
          %s309 = int_to_ptr.vmem [resolvable:$true] %s308
          %314 = dma.hbm_to_vmem [thread:$0]  %s5, 2048, %s309, [#allocation9], 128, 128, 8
        $region24: #{tpu_custom_call.1} parent=11 // pred_fallthru
          _
        // Predicated region
        $region25: #{tpu_custom_call.1} parent=11 // pred_check
          %p315 = pneg %p201
        $region26: #{tpu_custom_call.1} parent=11 // pred_check_branch
          %317 = sbr.rel (%p315) target = $region28
        $region27: #{tpu_custom_call.1} parent=11 // pred_region
          _
        $region28: #{tpu_custom_call.1} parent=11 // pred_fallthru
          _
        // Predicated region
        $region29: #{tpu_custom_call.1} parent=11 // pred_check
          %p318 = pneg %p222
        $region30: #{tpu_custom_call.1} parent=11 // pred_check_branch
          %320 = sbr.rel (%p318) target = $region32
        $region31: #{tpu_custom_call.1} parent=11 // pred_region
          _
        $region32: #{tpu_custom_call.1} parent=11 // pred_fallthru
          _
        // Predicated region
        $region33: #{tpu_custom_call.1} parent=11 // pred_check
          %p321 = pneg %p243
        $region34: #{tpu_custom_call.1} parent=11 // pred_check_branch
          %323 = sbr.rel (%p321) target = $region36
        $region35: #{tpu_custom_call.1} parent=11 // pred_region
          _
        $region36: #{tpu_custom_call.1} parent=11 // pred_fallthru
          _
      $region12: #{tpu_custom_call.1} parent=5 // pred_fallthru
        _
      %p324 = scmp.lt.s32.totalorder %s25, 2
      // Predicated region
      $region37: #{tpu_custom_call.1} parent=5 // pred_check
        %p325 = pneg %p324
      $region38: #{tpu_custom_call.1} parent=5 // pred_check_branch
        %327 = sbr.rel (%p325) target = $region40
      $region39: #{tpu_custom_call.1} parent=5 // pred_region
        // Predicated region
        $region41: #{tpu_custom_call.1} parent=39 // pred_check
          %p328 = pneg %p59
        $region42: #{tpu_custom_call.1} parent=39 // pred_check_branch
          %330 = sbr.rel (%p328) target = $region44
        $region43: #{tpu_custom_call.1} parent=39 // pred_region
          %s331 = sand.u32 %s49, 1
          %s332 = scalar_lea.sflag [#allocation3], %s331
          %s333 = sand.u32 %s49, 1
          %s334 = smul.addr %s333, 8
          %s335 = scalar_lea.vmem [#allocation2], %s334
          %s337 = ssub.s32 128, 128
          %338 = vsyncadd %s332, %s337
          %s339 = sadd.s32 %s33, %s32
          %s340 = smul.addr %s339, 128
          %s341 = scalar_lea.hbm %s0, %s340
          %s343 = sshll.u32 %s335, 4
          %s344 = int_to_ptr.vmem [resolvable:$true] %s343
          %346 = dma.hbm_to_vmem [thread:$0]  %s341, 128, %s344, %s332
        $region44: #{tpu_custom_call.1} parent=39 // pred_fallthru
          _
        // Predicated region
        $region45: #{tpu_custom_call.1} parent=39 // pred_check
          %p347 = pneg %p85
        $region46: #{tpu_custom_call.1} parent=39 // pred_check_branch
          %349 = sbr.rel (%p347) target = $region48
        $region47: #{tpu_custom_call.1} parent=39 // pred_region
          %s350 = sand.u32 %s25, 1
          %s351 = scalar_lea.sflag [#allocation6], %s350
          %s352 = sand.u32 %s75, 1
          %s353 = smul.addr %s352, 128
          %s354 = scalar_lea.vmem [#allocation5], %s353
          %s356 = ssub.s32 2048, 2048
          %357 = vsyncadd %s351, %s356
          %s358 = smul.addr %s32, 16
          %s359 = smul.addr %s358, 128
          %s360 = scalar_lea.hbm %s1, %s359
          %s361 = sshll.u32 %s354, 4
          %s362 = int_to_ptr.vmem [resolvable:$true] %s361
          %367 = dma.hbm_to_vmem [thread:$0]  %s360, 2048, %s362, %s351, 128, 128, 8
        $region48: #{tpu_custom_call.1} parent=39 // pred_fallthru
          _
        // Predicated region
        $region49: #{tpu_custom_call.1} parent=39 // pred_check
          %p368 = pneg %p111
        $region50: #{tpu_custom_call.1} parent=39 // pred_check_branch
          %370 = sbr.rel (%p368) target = $region52
        $region51: #{tpu_custom_call.1} parent=39 // pred_region
          %s371 = sand.u32 %s25, 1
          %s372 = scalar_lea.sflag [#allocation6], %s371
          %s373 = sand.u32 %s101, 1
          %s374 = smul.addr %s373, 128
          %s375 = scalar_lea.vmem [#allocation7], %s374
          %s377 = ssub.s32 2048, 2048
          %378 = vsyncadd %s372, %s377
          %s379 = smul.addr %s32, 16
          %s380 = smul.addr %s379, 128
          %s381 = scalar_lea.hbm %s2, %s380
          %s382 = sshll.u32 %s375, 4
          %s383 = int_to_ptr.vmem [resolvable:$true] %s382
          %388 = dma.hbm_to_vmem [thread:$0]  %s381, 2048, %s383, %s372, 128, 128, 8
        $region52: #{tpu_custom_call.1} parent=39 // pred_fallthru
          _
      $region40: #{tpu_custom_call.1} parent=5 // pred_fallthru
        _
      %p389 = scmp.le.s32.totalorder 1, %s25
      %p390 = scmp.lt.s32.totalorder %s25, 3
      %p391 = pnand %p389, %p390
      %p392 = pneg %p391
      // Predicated region
      $region53: #{tpu_custom_call.1} parent=5 // pred_check
        _
      $region54: #{tpu_custom_call.1} parent=5 // pred_check_branch
        %394 = sbr.rel (%p391) target = $region56
      $region55: #{tpu_custom_call.1} parent=5 // pred_region
        %s395 = ssub.s32 %s25, 1
        %s396 = sand.u32 %s52, 1
        %s397 = scalar_lea.sflag [#allocation3], %s396
        %s398 = sand.u32 %s52, 1
        %s399 = smul.addr %s398, 8
        %s400 = scalar_lea.vmem [#allocation2], %s399
        // Predicated region
        $region57: #{tpu_custom_call.1} parent=55 // pred_check
          %p401 = pneg %p65
        $region58: #{tpu_custom_call.1} parent=55 // pred_check_branch
          %403 = sbr.rel (%p401) target = $region60
        $region59: #{tpu_custom_call.1} parent=55 // pred_region
          %404 = dma.done %s397, 128
        $region60: #{tpu_custom_call.1} parent=55 // pred_fallthru
          _
        %s405 = sand.u32 %s30, 1
        %s406 = scalar_lea.sflag [#allocation6], %s405
        %s407 = sand.u32 %s78, 1
        %s408 = smul.addr %s407, 128
        %s409 = scalar_lea.vmem [#allocation5], %s408
        // Predicated region
        $region61: #{tpu_custom_call.1} parent=55 // pred_check
          %p410 = pneg %p91
        $region62: #{tpu_custom_call.1} parent=55 // pred_check_branch
          %412 = sbr.rel (%p410) target = $region64
        $region63: #{tpu_custom_call.1} parent=55 // pred_region
          %413 = dma.done %s406, 2048
        $region64: #{tpu_custom_call.1} parent=55 // pred_fallthru
          _
        %s414 = sand.u32 %s30, 1
        %s415 = scalar_lea.sflag [#allocation6], %s414
        %s416 = sand.u32 %s104, 1
        %s417 = smul.addr %s416, 128
        %s418 = scalar_lea.vmem [#allocation7], %s417
        // Predicated region
        $region65: #{tpu_custom_call.1} parent=55 // pred_check
          %p419 = pneg %p117
        $region66: #{tpu_custom_call.1} parent=55 // pred_check_branch
          %421 = sbr.rel (%p419) target = $region68
        $region67: #{tpu_custom_call.1} parent=55 // pred_region
          %422 = dma.done %s415, 2048
        $region68: #{tpu_custom_call.1} parent=55 // pred_fallthru
          _
        // Predicated region
        $region69: #{tpu_custom_call.1} parent=55 // pred_check
          %p423 = pneg %p138
        $region70: #{tpu_custom_call.1} parent=55 // pred_check_branch
          %425 = sbr.rel (%p423) target = $region72
        $region71: #{tpu_custom_call.1} parent=55 // pred_region
          %426 = dma.done [#allocation9], 2048
        $region72: #{tpu_custom_call.1} parent=55 // pred_fallthru
          _
        // Predicated region
        $region73: #{tpu_custom_call.1} parent=55 // pred_check
          %p427 = pneg %p180
        $region74: #{tpu_custom_call.1} parent=55 // pred_check_branch
          %429 = sbr.rel (%p427) target = $region76
        $region75: #{tpu_custom_call.1} parent=55 // pred_region
          %430 = dma.done [#allocation9], 2048
        $region76: #{tpu_custom_call.1} parent=55 // pred_fallthru
          _
        %s431 = sand.u32 %s52, 1
        %s432 = scalar_lea.sflag [#allocation3], %s431
        %s433 = sand.u32 %s52, 1
        %s434 = smul.addr %s433, 8
        %s435 = scalar_lea.vmem [#allocation2], %s434
        %p436 = pneg %p65
        %p437 = pneg %p62
        %s438 = sand.u32 %s30, 1
        %s439 = scalar_lea.sflag [#allocation6], %s438
        %s440 = sand.u32 %s78, 1
        %s441 = smul.addr %s440, 128
        %s442 = scalar_lea.vmem [#allocation5], %s441
        %p443 = pneg %p91
        %p444 = pneg %p88
        %s445 = sand.u32 %s30, 1
        %s446 = scalar_lea.sflag [#allocation6], %s445
        %s447 = sand.u32 %s104, 1
        %s448 = smul.addr %s447, 128
        %s449 = scalar_lea.vmem [#allocation7], %s448
        %p450 = pneg %p117
        %p451 = pneg %p114
        %p452 = pneg %p138
        %p453 = pneg %p135
        %p454 = pneg %p159
        %p455 = pneg %p156
        %p456 = pneg %p180
        %p457 = pneg %p177
        %p458 = pneg %p201
        %p459 = pneg %p198
        %p460 = pneg %p222
        %p461 = pneg %p219
        %p462 = pneg %p243
        %p463 = pneg %p240
        %p464 = pneg %p271
        %p465 = pneg %p268
        %s466 = sand.u32 %s258, 1
        %s467 = scalar_lea.sflag [#allocation4], %s466
        %s468 = sand.u32 %s258, 1
        %s469 = smul.addr %s468, 8
        %s470 = scalar_lea.vmem [#allocation11], %s469
        %v471 = vld [vmem:[%s400] sm:$0xff]
        %v472 = vld [vmem:[%s409] sm:$0xff]
        %v473 = vld [vmem:[%s409 + $0x8] sm:$0xff]
        %v474 = vld [vmem:[%s409 + $0x10] sm:$0xff]
        %v475 = vld [vmem:[%s409 + $0x18] sm:$0xff]
        %v476 = vld [vmem:[%s409 + $0x20] sm:$0xff]
        %v477 = vld [vmem:[%s409 + $0x28] sm:$0xff]
        %v478 = vld [vmem:[%s409 + $0x30] sm:$0xff]
        %v479 = vld [vmem:[%s409 + $0x38] sm:$0xff]
        %v480 = vld [vmem:[%s409 + $0x40] sm:$0xff]
        %v481 = vld [vmem:[%s409 + $0x48] sm:$0xff]
        %v482 = vld [vmem:[%s409 + $0x50] sm:$0xff]
        %v483 = vld [vmem:[%s409 + $0x58] sm:$0xff]
        %v484 = vld [vmem:[%s409 + $0x60] sm:$0xff]
        %v485 = vld [vmem:[%s409 + $0x68] sm:$0xff]
        %v486 = vld [vmem:[%s409 + $0x70] sm:$0xff]
        %v487 = vld [vmem:[%s409 + $0x78] sm:$0xff]
        %v488 = vld [vmem:[%s418] sm:$0xff]
        %v489 = vld [vmem:[%s418 + $0x8] sm:$0xff]
        %v490 = vld [vmem:[%s418 + $0x10] sm:$0xff]
        %v491 = vld [vmem:[%s418 + $0x18] sm:$0xff]
        %v492 = vld [vmem:[%s418 + $0x20] sm:$0xff]
        %v493 = vld [vmem:[%s418 + $0x28] sm:$0xff]
        %v494 = vld [vmem:[%s418 + $0x30] sm:$0xff]
        %v495 = vld [vmem:[%s418 + $0x38] sm:$0xff]
        %v496 = vld [vmem:[%s418 + $0x40] sm:$0xff]
        %v497 = vld [vmem:[%s418 + $0x48] sm:$0xff]
        %v498 = vld [vmem:[%s418 + $0x50] sm:$0xff]
        %v499 = vld [vmem:[%s418 + $0x58] sm:$0xff]
        %v500 = vld [vmem:[%s418 + $0x60] sm:$0xff]
        %v501 = vld [vmem:[%s418 + $0x68] sm:$0xff]
        %v502 = vld [vmem:[%s418 + $0x70] sm:$0xff]
        %v503 = vld [vmem:[%s418 + $0x78] sm:$0xff]
        %v504 = vmul.f32 %v471, 0.17677669
        %505 = vmatprep.subr.mxu0 0.0
        %506 = vmatpush1.xpose.msra.mxu0 %v487
        %507 = vmatprep.subr.mxu0 0.0
        %508 = vmatpush1.xpose.msra.mxu0 %v486
        %509 = vmatprep.subr.mxu0 0.0
        %510 = vmatpush1.xpose.msra.mxu0 %v485
        %511 = vmatprep.subr.mxu0 0.0
        %512 = vmatpush1.xpose.msra.mxu0 %v484
        %513 = vmatprep.subr.mxu0 0.0
        %514 = vmatpush1.xpose.msra.mxu0 %v483
        %515 = vmatprep.subr.mxu0 0.0
        %516 = vmatpush1.xpose.msra.mxu0 %v482
        %517 = vmatprep.subr.mxu0 0.0
        %518 = vmatpush1.xpose.msra.mxu0 %v481
        %519 = vmatprep.subr.mxu0 0.0
        %520 = vmatpush1.xpose.msra.mxu0 %v480
        %521 = vmatprep.subr.mxu0 0.0
        %522 = vmatpush1.xpose.msra.mxu0 %v479
        %523 = vmatprep.subr.mxu0 0.0
        %524 = vmatpush1.xpose.msra.mxu0 %v478
        %525 = vmatprep.subr.mxu0 0.0
        %526 = vmatpush1.xpose.msra.mxu0 %v477
        %527 = vmatprep.subr.mxu0 0.0
        %528 = vmatpush1.xpose.msra.mxu0 %v476
        %529 = vmatprep.subr.mxu0 0.0
        %530 = vmatpush1.xpose.msra.mxu0 %v475
        %531 = vmatprep.subr.mxu0 0.0
        %532 = vmatpush1.xpose.msra.mxu0 %v474
        %533 = vmatprep.subr.mxu0 0.0
        %534 = vmatpush1.xpose.msra.mxu0 %v473
        %535 = vmatprep.subr.mxu0 0.0
        %536 = vmatpush1.xpose.msra.mxu0 %v472
        %537 = vmatprep.subr.mxu0 0.0
        %538 = vmatpush2.xpose.msra.mxu0 0.0
        %539 = vmatprep.subr.mxu0 0.0
        %540 = vmatpush2.xpose.msra.mxu0 0.0
        %541 = vmatprep.subr.mxu0 0.0
        %542 = vmatpush2.xpose.msra.mxu0 0.0
        %543 = vmatprep.subr.mxu0 0.0
        %544 = vmatpush2.xpose.msra.mxu0 0.0
        %545 = vmatprep.subr.mxu0 0.0
        %546 = vmatpush2.xpose.msra.mxu0 0.0
        %547 = vmatprep.subr.mxu0 0.0
        %548 = vmatpush2.xpose.msra.mxu0 0.0
        %549 = vmatprep.subr.mxu0 0.0
        %550 = vmatpush2.xpose.msra.mxu0 0.0
        %551 = vmatprep.subr.mxu0 0.0
        %552 = vmatpush2.xpose.msra.mxu0 0.0
        %553 = vmatprep.subr.mxu0 0.0
        %554 = vmatpush2.xpose.msra.mxu0 0.0
        %555 = vmatprep.subr.mxu0 0.0
        %556 = vmatpush2.xpose.msra.mxu0 0.0
        %557 = vmatprep.subr.mxu0 0.0
        %558 = vmatpush2.xpose.msra.mxu0 0.0
        %559 = vmatprep.subr.mxu0 0.0
        %560 = vmatpush2.xpose.msra.mxu0 0.0
        %561 = vmatprep.subr.mxu0 0.0
        %562 = vmatpush2.xpose.msra.mxu0 0.0
        %563 = vmatprep.subr.mxu0 0.0
        %564 = vmatpush2.xpose.msra.mxu0 0.0
        %565 = vmatprep.subr.mxu0 0.0
        %566 = vmatpush2.xpose.msra.mxu0 0.0
        %567 = vmatprep.subr.mxu0 0.0
        %568 = vmatpush2.xpose.msra.mxu0 0.0
        %569 = vmatprep.mubr.f32.mxu0 0.0
        %570 = vmatmul.mubr.f32.gmra.mxu0 %v504
        %v571 = vpop.f32.mrf.mxu0
        %v572 = vadd.f32 0.0, %v571
        %v573 = vpop.f32.mrf.mxu0
        %574 = vdwg.mxu0
        %v575 = vlaneseq
        %v576 = vand.u32 %v575, 127
        %vm577 = vcmp.lt.s32.totalorder %v576, 8
        %v578 = vsel %vm577, %v572, -1e+30
        %579 = vmax.xlane.f32.xlu0 %v578
        %v580 = vpop.xlane.xlu0 %579
        %v581 = vsub.f32 %v578, %v580
        %v582 = vmul.f32 %v581, 1.442695
        %v583 = vpow.pop %v582
        %584 = vadd.xlane.f32.xlu0 %v583
        %v585 = vpop.xlane.xlu0 %584
        %v586 = vrcp.pop %v585
        %v587 = vmul.f32 %v583, %v586
        %588 = vmatprep.subr.mxu0 0.0
        %589 = vmatpush1.msra.mxu0 %v503
        %590 = vmatprep.subr.mxu0 0.0
        %591 = vmatpush1.msra.mxu0 %v502
        %592 = vmatprep.subr.mxu0 0.0
        %593 = vmatpush1.msra.mxu0 %v501
        %594 = vmatprep.subr.mxu0 0.0
        %595 = vmatpush1.msra.mxu0 %v500
        %596 = vmatprep.subr.mxu0 0.0
        %597 = vmatpush1.msra.mxu0 %v499
        %598 = vmatprep.subr.mxu0 0.0
        %599 = vmatpush1.msra.mxu0 %v498
        %600 = vmatprep.subr.mxu0 0.0
        %601 = vmatpush1.msra.mxu0 %v497
        %602 = vmatprep.subr.mxu0 0.0
        %603 = vmatpush1.msra.mxu0 %v496
        %604 = vmatprep.subr.mxu0 0.0
        %605 = vmatpush1.msra.mxu0 %v495
        %606 = vmatprep.subr.mxu0 0.0
        %607 = vmatpush1.msra.mxu0 %v494
        %608 = vmatprep.subr.mxu0 0.0
        %609 = vmatpush1.msra.mxu0 %v493
        %610 = vmatprep.subr.mxu0 0.0
        %611 = vmatpush1.msra.mxu0 %v492
        %612 = vmatprep.subr.mxu0 0.0
        %613 = vmatpush1.msra.mxu0 %v491
        %614 = vmatprep.subr.mxu0 0.0
        %615 = vmatpush1.msra.mxu0 %v490
        %616 = vmatprep.subr.mxu0 0.0
        %617 = vmatpush1.msra.mxu0 %v489
        %618 = vmatprep.subr.mxu0 0.0
        %619 = vmatpush1.msra.mxu0 %v488
        %620 = vmatprep.subr.mxu0 0.0
        %621 = vmatpush2.msra.mxu0 0.0
        %622 = vmatprep.subr.mxu0 0.0
        %623 = vmatpush2.msra.mxu0 0.0
        %624 = vmatprep.subr.mxu0 0.0
        %625 = vmatpush2.msra.mxu0 0.0
        %626 = vmatprep.subr.mxu0 0.0
        %627 = vmatpush2.msra.mxu0 0.0
        %628 = vmatprep.subr.mxu0 0.0
        %629 = vmatpush2.msra.mxu0 0.0
        %630 = vmatprep.subr.mxu0 0.0
        %631 = vmatpush2.msra.mxu0 0.0
        %632 = vmatprep.subr.mxu0 0.0
        %633 = vmatpush2.msra.mxu0 0.0
        %634 = vmatprep.subr.mxu0 0.0
        %635 = vmatpush2.msra.mxu0 0.0
        %636 = vmatprep.subr.mxu0 0.0
        %637 = vmatpush2.msra.mxu0 0.0
        %638 = vmatprep.subr.mxu0 0.0
        %639 = vmatpush2.msra.mxu0 0.0
        %640 = vmatprep.subr.mxu0 0.0
        %641 = vmatpush2.msra.mxu0 0.0
        %642 = vmatprep.subr.mxu0 0.0
        %643 = vmatpush2.msra.mxu0 0.0
        %644 = vmatprep.subr.mxu0 0.0
        %645 = vmatpush2.msra.mxu0 0.0
        %646 = vmatprep.subr.mxu0 0.0
        %647 = vmatpush2.msra.mxu0 0.0
        %648 = vmatprep.subr.mxu0 0.0
        %649 = vmatpush2.msra.mxu0 0.0
        %650 = vmatprep.subr.mxu0 0.0
        %651 = vmatpush2.msra.mxu0 0.0
        %652 = vmatprep.mubr.f32.mxu0 0.0
        %653 = vmatmul.mubr.f32.gmra.mxu0 %v587
        %v654 = vpop.f32.mrf.mxu0
        %v655 = vadd.f32 0.0, %v654
        %v656 = vpop.f32.mrf.mxu0
        %657 = vdwg.mxu0
        %v658 = vadd.f32 %v471, %v655
        %v659 = vld [vmem:[#allocation8] sm:$0xff]
        %v660 = vld [vmem:[#allocation8 + $0x8] sm:$0xff]
        %v661 = vld [vmem:[#allocation8 + $0x10] sm:$0xff]
        %v662 = vld [vmem:[#allocation8 + $0x18] sm:$0xff]
        %v663 = vld [vmem:[#allocation8 + $0x20] sm:$0xff]
        %v664 = vld [vmem:[#allocation8 + $0x28] sm:$0xff]
        %v665 = vld [vmem:[#allocation8 + $0x30] sm:$0xff]
        %v666 = vld [vmem:[#allocation8 + $0x38] sm:$0xff]
        %v667 = vld [vmem:[#allocation8 + $0x40] sm:$0xff]
        %v668 = vld [vmem:[#allocation8 + $0x48] sm:$0xff]
        %v669 = vld [vmem:[#allocation8 + $0x50] sm:$0xff]
        %v670 = vld [vmem:[#allocation8 + $0x58] sm:$0xff]
        %v671 = vld [vmem:[#allocation8 + $0x60] sm:$0xff]
        %v672 = vld [vmem:[#allocation8 + $0x68] sm:$0xff]
        %v673 = vld [vmem:[#allocation8 + $0x70] sm:$0xff]
        %v674 = vld [vmem:[#allocation8 + $0x78] sm:$0xff]
        %v675 = vld [vmem:[%s4] sm:$0x1]
        %v677 = vlaneseq
        %v678 = vshrl.u32 %v677, 7
        %v679 = vsub.s32 0, %v678
        %v680 = vrot.slane %v675, %v679
        %682 = vmatprep.subr.mxu0 0.0
        %683 = vmatpush1.msra.mxu0 %v674
        %684 = vmatprep.subr.mxu0 0.0
        %685 = vmatpush1.msra.mxu0 %v673
        %686 = vmatprep.subr.mxu0 0.0
        %687 = vmatpush1.msra.mxu0 %v672
        %688 = vmatprep.subr.mxu0 0.0
        %689 = vmatpush1.msra.mxu0 %v671
        %690 = vmatprep.subr.mxu0 0.0
        %691 = vmatpush1.msra.mxu0 %v670
        %692 = vmatprep.subr.mxu0 0.0
        %693 = vmatpush1.msra.mxu0 %v669
        %694 = vmatprep.subr.mxu0 0.0
        %695 = vmatpush1.msra.mxu0 %v668
        %696 = vmatprep.subr.mxu0 0.0
        %697 = vmatpush1.msra.mxu0 %v667
        %698 = vmatprep.subr.mxu0 0.0
        %699 = vmatpush1.msra.mxu0 %v666
        %700 = vmatprep.subr.mxu0 0.0
        %701 = vmatpush1.msra.mxu0 %v665
        %702 = vmatprep.subr.mxu0 0.0
        %703 = vmatpush1.msra.mxu0 %v664
        %704 = vmatprep.subr.mxu0 0.0
        %705 = vmatpush1.msra.mxu0 %v663
        %706 = vmatprep.subr.mxu0 0.0
        %707 = vmatpush1.msra.mxu0 %v662
        %708 = vmatprep.subr.mxu0 0.0
        %709 = vmatpush1.msra.mxu0 %v661
        %710 = vmatprep.subr.mxu0 0.0
        %711 = vmatpush1.msra.mxu0 %v660
        %712 = vmatprep.subr.mxu0 0.0
        %713 = vmatpush1.msra.mxu0 %v659
        %714 = vmatprep.subr.mxu0 0.0
        %715 = vmatpush2.msra.mxu0 0.0
        %716 = vmatprep.subr.mxu0 0.0
        %717 = vmatpush2.msra.mxu0 0.0
        %718 = vmatprep.subr.mxu0 0.0
        %719 = vmatpush2.msra.mxu0 0.0
        %720 = vmatprep.subr.mxu0 0.0
        %721 = vmatpush2.msra.mxu0 0.0
        %722 = vmatprep.subr.mxu0 0.0
        %723 = vmatpush2.msra.mxu0 0.0
        %724 = vmatprep.subr.mxu0 0.0
        %725 = vmatpush2.msra.mxu0 0.0
        %726 = vmatprep.subr.mxu0 0.0
        %727 = vmatpush2.msra.mxu0 0.0
        %728 = vmatprep.subr.mxu0 0.0
        %729 = vmatpush2.msra.mxu0 0.0
        %730 = vmatprep.subr.mxu0 0.0
        %731 = vmatpush2.msra.mxu0 0.0
        %732 = vmatprep.subr.mxu0 0.0
        %733 = vmatpush2.msra.mxu0 0.0
        %734 = vmatprep.subr.mxu0 0.0
        %735 = vmatpush2.msra.mxu0 0.0
        %736 = vmatprep.subr.mxu0 0.0
        %737 = vmatpush2.msra.mxu0 0.0
        %738 = vmatprep.subr.mxu0 0.0
        %739 = vmatpush2.msra.mxu0 0.0
        %740 = vmatprep.subr.mxu0 0.0
        %741 = vmatpush2.msra.mxu0 0.0
        %742 = vmatprep.subr.mxu0 0.0
        %743 = vmatpush2.msra.mxu0 0.0
        %744 = vmatprep.subr.mxu0 0.0
        %745 = vmatpush2.msra.mxu0 0.0
        %746 = vmatprep.mubr.f32.mxu0 0.0
        %747 = vmatmul.mubr.f32.gmra.mxu0 %v658
        %v748 = vpop.f32.mrf.mxu0
        %v749 = vadd.f32 %v680, %v748
        %v750 = vpop.f32.mrf.mxu0
        %751 = vdwg.mxu0
        %v752 = vmax.f32 %v749, 0.0
        %v753 = vld [vmem:[#allocation10] sm:$0xff]
        %v754 = vld [vmem:[#allocation10 + $0x8] sm:$0xff]
        %v755 = vld [vmem:[#allocation10 + $0x10] sm:$0xff]
        %v756 = vld [vmem:[#allocation10 + $0x18] sm:$0xff]
        %v757 = vld [vmem:[#allocation10 + $0x20] sm:$0xff]
        %v758 = vld [vmem:[#allocation10 + $0x28] sm:$0xff]
        %v759 = vld [vmem:[#allocation10 + $0x30] sm:$0xff]
        %v760 = vld [vmem:[#allocation10 + $0x38] sm:$0xff]
        %v761 = vld [vmem:[#allocation10 + $0x40] sm:$0xff]
        %v762 = vld [vmem:[#allocation10 + $0x48] sm:$0xff]
        %v763 = vld [vmem:[#allocation10 + $0x50] sm:$0xff]
        %v764 = vld [vmem:[#allocation10 + $0x58] sm:$0xff]
        %v765 = vld [vmem:[#allocation10 + $0x60] sm:$0xff]
        %v766 = vld [vmem:[#allocation10 + $0x68] sm:$0xff]
        %v767 = vld [vmem:[#allocation10 + $0x70] sm:$0xff]
        %v768 = vld [vmem:[#allocation10 + $0x78] sm:$0xff]
        %v769 = vld [vmem:[%s6] sm:$0x1]
        %v771 = vlaneseq
        %v772 = vshrl.u32 %v771, 7
        %v773 = vsub.s32 0, %v772
        %v774 = vrot.slane %v769, %v773
        %776 = vmatprep.subr.mxu0 0.0
        %777 = vmatpush1.msra.mxu0 %v768
        %778 = vmatprep.subr.mxu0 0.0
        %779 = vmatpush1.msra.mxu0 %v767
        %780 = vmatprep.subr.mxu0 0.0
        %781 = vmatpush1.msra.mxu0 %v766
        %782 = vmatprep.subr.mxu0 0.0
        %783 = vmatpush1.msra.mxu0 %v765
        %784 = vmatprep.subr.mxu0 0.0
        %785 = vmatpush1.msra.mxu0 %v764
        %786 = vmatprep.subr.mxu0 0.0
        %787 = vmatpush1.msra.mxu0 %v763
        %788 = vmatprep.subr.mxu0 0.0
        %789 = vmatpush1.msra.mxu0 %v762
        %790 = vmatprep.subr.mxu0 0.0
        %791 = vmatpush1.msra.mxu0 %v761
        %792 = vmatprep.subr.mxu0 0.0
        %793 = vmatpush1.msra.mxu0 %v760
        %794 = vmatprep.subr.mxu0 0.0
        %795 = vmatpush1.msra.mxu0 %v759
        %796 = vmatprep.subr.mxu0 0.0
        %797 = vmatpush1.msra.mxu0 %v758
        %798 = vmatprep.subr.mxu0 0.0
        %799 = vmatpush1.msra.mxu0 %v757
        %800 = vmatprep.subr.mxu0 0.0
        %801 = vmatpush1.msra.mxu0 %v756
        %802 = vmatprep.subr.mxu0 0.0
        %803 = vmatpush1.msra.mxu0 %v755
        %804 = vmatprep.subr.mxu0 0.0
        %805 = vmatpush1.msra.mxu0 %v754
        %806 = vmatprep.subr.mxu0 0.0
        %807 = vmatpush1.msra.mxu0 %v753
        %808 = vmatprep.subr.mxu0 0.0
        %809 = vmatpush2.msra.mxu0 0.0
        %810 = vmatprep.subr.mxu0 0.0
        %811 = vmatpush2.msra.mxu0 0.0
        %812 = vmatprep.subr.mxu0 0.0
        %813 = vmatpush2.msra.mxu0 0.0
        %814 = vmatprep.subr.mxu0 0.0
        %815 = vmatpush2.msra.mxu0 0.0
        %816 = vmatprep.subr.mxu0 0.0
        %817 = vmatpush2.msra.mxu0 0.0
        %818 = vmatprep.subr.mxu0 0.0
        %819 = vmatpush2.msra.mxu0 0.0
        %820 = vmatprep.subr.mxu0 0.0
        %821 = vmatpush2.msra.mxu0 0.0
        %822 = vmatprep.subr.mxu0 0.0
        %823 = vmatpush2.msra.mxu0 0.0
        %824 = vmatprep.subr.mxu0 0.0
        %825 = vmatpush2.msra.mxu0 0.0
        %826 = vmatprep.subr.mxu0 0.0
        %827 = vmatpush2.msra.mxu0 0.0
        %828 = vmatprep.subr.mxu0 0.0
        %829 = vmatpush2.msra.mxu0 0.0
        %830 = vmatprep.subr.mxu0 0.0
        %831 = vmatpush2.msra.mxu0 0.0
        %832 = vmatprep.subr.mxu0 0.0
        %833 = vmatpush2.msra.mxu0 0.0
        %834 = vmatprep.subr.mxu0 0.0
        %835 = vmatpush2.msra.mxu0 0.0
        %836 = vmatprep.subr.mxu0 0.0
        %837 = vmatpush2.msra.mxu0 0.0
        %838 = vmatprep.subr.mxu0 0.0
        %839 = vmatpush2.msra.mxu0 0.0
        %840 = vmatprep.mubr.f32.mxu0 0.0
        %841 = vmatmul.mubr.f32.gmra.mxu0 %v752
        %v842 = vpop.f32.mrf.mxu0
        %v843 = vadd.f32 %v774, %v842
        %v844 = vpop.f32.mrf.mxu0
        %845 = vdwg.mxu0
        %v846 = vadd.f32 %v843, %v658
        %847 = vst [vmem:[%s470] sm:$0xff] %v846
        %s848 = sand.u32 %s258, 1
        %s849 = scalar_lea.sflag [#allocation4], %s848
        %s850 = sand.u32 %s258, 1
        %s851 = smul.addr %s850, 8
        %s852 = scalar_lea.vmem [#allocation11], %s851
        // Predicated region
        $region77: #{tpu_custom_call.1} parent=55 // pred_check
          %p853 = pneg %p268
        $region78: #{tpu_custom_call.1} parent=55 // pred_check_branch
          %855 = sbr.rel (%p853) target = $region80
        $region79: #{tpu_custom_call.1} parent=55 // pred_region
          %s857 = ssub.s32 128, 128
          %858 = vsyncadd %s849, %s857
          %s859 = sadd.s32 %s35, %s34
          %s860 = smul.addr %s859, 128
          %s861 = scalar_lea.hbm %s9, %s860
          %s863 = sshll.u32 %s852, 4
          %s864 = int_to_ptr.vmem [resolvable:$true] %s863
          %866 = dma.vmem_to_hbm [thread:$0]  %s864, 128, %s861, %s849
        $region80: #{tpu_custom_call.1} parent=55 // pred_fallthru
          _
      $region56: #{tpu_custom_call.1} parent=5 // pred_fallthru
        _
      %p867 = scmp.le.s32.totalorder 2, %s25
      // Predicated region
      $region81: #{tpu_custom_call.1} parent=5 // pred_check
        %p868 = pneg %p867
      $region82: #{tpu_custom_call.1} parent=5 // pred_check_branch
        %870 = sbr.rel (%p868) target = $region84
      $region83: #{tpu_custom_call.1} parent=5 // pred_region
        %s871 = ssub.s32 %s25, 2
        // Predicated region
        $region85: #{tpu_custom_call.1} parent=83 // pred_check
          %p872 = pneg %p274
        $region86: #{tpu_custom_call.1} parent=83 // pred_check_branch
          %874 = sbr.rel (%p872) target = $region88
        $region87: #{tpu_custom_call.1} parent=83 // pred_region
          %s875 = sand.u32 %s259, 1
          %s876 = scalar_lea.sflag [#allocation4], %s875
          %s877 = sand.u32 %s259, 1
          %s878 = smul.addr %s877, 8
          %s879 = scalar_lea.vmem [#allocation11], %s878
          %880 = dma.done %s876, 128
        $region88: #{tpu_custom_call.1} parent=83 // pred_fallthru
          _
      $region84: #{tpu_custom_call.1} parent=5 // pred_fallthru
        _
    $region6: #{tpu_custom_call.1} parent=1 // loop_footer
      %s29 = sadd.s32 1, %s25
    $region7: #{tpu_custom_call.1} parent=1 // loop_footer_branch
      %24 = sbr.rel target = $region3
    $region8: #{tpu_custom_call.1} parent=1 // loop_exit
      _
    %881 = vsyncpa [#allocation3], 1
    %s882 = scalar_lea.sflag [#allocation3], 1
    %883 = vsyncpa %s882, 1
    %884 = vsyncpa [#allocation6], 1
    %s885 = scalar_lea.sflag [#allocation6], 1
    %886 = vsyncpa %s885, 1
    %887 = vsyncpa [#allocation9], 1
    %888 = vsyncpa [#allocation4], 1
    %s889 = scalar_lea.sflag [#allocation4], 1
    %890 = vsyncpa %s889, 1

</llo_original>
